<compile_context>
chip_gen: v6e
topology: v6e:2x2x1
jax: 0.10.0
libtpu: 0.0.40
codegen_flags: <defaults>
</compile_context>

<pallas_src>
import functools
import math

import jax
import jax.numpy as jnp
from jax import lax
from jax.experimental import pallas as pl
from jax.experimental.pallas import tpu as pltpu


def _elu(x):
    # ELU, alpha=1.0 (PyTorch default).  exp(x)-1 (guaranteed EUP lowering);
    # differs from expm1 by <1e-7 in f32.
    return jnp.where(x > 0, x, jnp.exp(x) - 1.0)


def make_mlp_kernel(n_hidden):
    """Kernel over refs = (x, w_0, b_0, ..., w_{n-1}, b_{n-1}, wo_col, bo, out)."""

    def kernel(x_ref, *refs):
        out_ref = refs[-1]
        wo_ref, bo_ref = refs[-3], refs[-2]

        # First hidden layer: NT dot_general (contract both operands' last
        # dim).  Result comes out already "transposed" as [H0, tb] with the
        # batch on the 128-lane axis for every subsequent matmul.
        w0 = refs[0][...]                                 # [H0, F]  f32
        b0 = refs[1][...]                                 # [H0, 1]  f32
        z = lax.dot_general(
            w0, x_ref[...], (((1,), (1,)), ((), ())),
            preferred_element_type=jnp.float32) + b0      # [H0, tb] f32
        h = _elu(z)

        # Remaining hidden blocks: plain W @ h chains; batch stays on lanes.
        for l in range(1, n_hidden):
            w = refs[2 * l][...]                          # [H_out, H_in] f32
            b = refs[2 * l + 1][...]                      # [H_out, 1]    f32
            z = jnp.dot(w, h, preferred_element_type=jnp.float32) + b
            h = _elu(z)                                   # [H_out, tb]   f32

        # Output layer (H -> 1): VPU multiply + sublane reduction emits the
        # lane-dense (1, tb) output row directly (cheaper than an M=1 matmul).
        out_ref[...] = (jnp.sum(h * wo_ref[...], axis=0, keepdims=True)
                        + bo_ref[...])                    # [1, tb] f32

    return kernel


def _tensorcores_per_chip():
    """Best-effort TensorCore count for the local chip (fallback: 1)."""
    try:
        d = jax.devices()[0]
        for attr in ("num_cores", "core_count"):
            n = getattr(d, attr, None)
            if isinstance(n, int) and n > 0:
                return max(1, min(int(n), 2))
    except Exception:
        pass
    return 1


def mlp3newft_forward(x, params, *, num_grid_steps=None):
    """x: [B, input_size] float32. Returns [B] float32."""
    ws, bs, wo_col, bo = params
    B, F = x.shape
    n_hidden = len(ws)

    if num_grid_steps is None:
        num_grid_steps = _tensorcores_per_chip()
    num_grid_steps = max(1, int(num_grid_steps))

    # One grid step per TensorCore.  grid=1 needs no alignment (blocks equal
    # the full arrays); multi-step grids need lane-aligned (128) batch tiles.
    if num_grid_steps == 1:
        tb, B_pad = B, B
    else:
        tb = -(-(-(-B // num_grid_steps)) // 128) * 128   # ceil(B/steps) -> x128
        B_pad = tb * num_grid_steps
        if tb >= B:                       # too small to be worth splitting
            num_grid_steps, tb, B_pad = 1, B, B

    x_p = x if B_pad == B else jnp.pad(x, ((0, B_pad - B), (0, 0)))

    const = lambda a: pl.BlockSpec(a.shape, lambda i: (0, 0))
    in_specs = [pl.BlockSpec((tb, F), lambda i: (i, 0))]   # x batch tile
    operands = [x_p]
    for w, b in zip(ws, bs):
        in_specs += [const(w), const(b)]                   # resident weights
        operands += [w, b]
    in_specs += [const(wo_col), const(bo)]
    operands += [wo_col, bo]

    hs = [w.shape[0] for w in ws]
    flops = 2 * B_pad * (sum(i * o for i, o in zip([F] + hs[:-1], hs)) + hs[-1])
    param_bytes = sum(int(a.size) * 4 for a in operands[1:])
    cost = pl.CostEstimate(
        flops=int(flops),
        transcendentals=int(B_pad * sum(hs)),
        bytes_accessed=int((x_p.size + B_pad) * 4 + param_bytes),
    )

    out2d = pl.pallas_call(
        make_mlp_kernel(n_hidden),
        out_shape=jax.ShapeDtypeStruct((1, B_pad), jnp.float32),
        grid=(num_grid_steps,),
        in_specs=in_specs,
        out_specs=pl.BlockSpec((1, tb), lambda i: (0, i)),  # lane-dense output
        compiler_params=pltpu.CompilerParams(
            dimension_semantics=("parallel",)),             # multi-TC sharding
        cost_estimate=cost,
    )(*operands)

    return out2d[0, :B]     # .squeeze() of the output layer


def init_params(key, input_size, hidden_sizes):
    """PyTorch-style uniform(-1/sqrt(fan_in), 1/sqrt(fan_in)) init, all f32.

    Hidden weights kept in native PyTorch [out, in] layout; biases stored as
    [out, 1] columns (lane-broadcast against [out, tb] activations).  Output
    layer stored as a [H, 1] column + a [1, 1] bias.
    """
    def linear(k, fan_in, fan_out):
        kw, kb = jax.random.split(k)
        bound = 1.0 / math.sqrt(fan_in)
        w = jax.random.uniform(kw, (fan_out, fan_in), jnp.float32, -bound, bound)
        b = jax.random.uniform(kb, (fan_out, 1), jnp.float32, -bound, bound)
        return w, b

    keys = jax.random.split(key, len(hidden_sizes) + 1)
    ws, bs = [], []
    fan_in = input_size
    for k, h in zip(keys[:-1], hidden_sizes):
        w, b = linear(k, fan_in, h)
        ws.append(w)
        bs.append(b)
        fan_in = h
    wo, bo = linear(keys[-1], fan_in, 1)     # output_layer: [1, H], [1, 1]
    return ws, bs, wo.T, bo                  # wo.T: [H, 1] column


def reference_forward(x, params):
    """Pure-JAX f32 reference of MLP3NEWFT.forward."""
    ws, bs, wo_col, bo = params
    h = x
    for w, b in zip(ws, bs):
        z = jnp.dot(h, w.T, precision="highest") + b[:, 0]
        h = jnp.where(z > 0, z, jnp.expm1(z))
    return jnp.dot(h, wo_col[:, 0], precision="highest") + bo[0, 0]


if __name__ == "__main__":
    input_size = 24
    hidden_size = [32, 32]            # MLP3NEW hidden layers
    additional_hidden_size = [32]     # MLP3NEWFT additional_layers
    B = 256                           # small batch; tiles stay legal either way

    key = jax.random.PRNGKey(0)
    k_x, k_p = jax.random.split(key)
    x = jax.random.normal(k_x, (B, input_size), jnp.float32)
    params = init_params(k_p, input_size, hidden_size + additional_hidden_size)

    steps = _tensorcores_per_chip()   # 1 on v5e/v6e, 2 on megacore/v7x
    fwd = jax.jit(functools.partial(mlp3newft_forward, num_grid_steps=steps))
    out = jax.block_until_ready(fwd(x, params))

    ref = reference_forward(x, params)
    assert out.shape == (B,)
    max_err = float(jnp.max(jnp.abs(out - ref)))
    assert jnp.allclose(out, ref, atol=5e-3, rtol=5e-3), max_err

    print("KERNEL_OK")
</pallas_src>

<mosaic_0001>
module attributes {stable_mosaic.version = 11 : i64} {
  func.func @kernel(%arg0: i32, %arg1: memref<256x24xf32, #tpu.memory_space<vmem>>, %arg2: memref<32x24xf32, #tpu.memory_space<vmem>>, %arg3: memref<32x1xf32, #tpu.memory_space<vmem>>, %arg4: memref<32x32xf32, #tpu.memory_space<vmem>>, %arg5: memref<32x1xf32, #tpu.memory_space<vmem>>, %arg6: memref<32x32xf32, #tpu.memory_space<vmem>>, %arg7: memref<32x1xf32, #tpu.memory_space<vmem>>, %arg8: memref<32x1xf32, #tpu.memory_space<vmem>>, %arg9: memref<1x1xf32, #tpu.memory_space<vmem>>, %arg10: memref<1x256xf32, #tpu.memory_space<vmem>>) attributes {dimension_semantics = [#tpu.dimension_semantics<parallel>], iteration_bounds = array<i64: 1>, scalar_prefetch = 0 : i64, scratch_operands = 0 : i64, tpu.core_type = #tpu.core_type<tc>, window_params = [{transform_indices = @transform_0, window_bounds = array<i64: 256, 24>}, {pipeline_mode = #tpu.pipeline_mode<synchronous>, transform_indices = @transform_1, window_bounds = array<i64: 32, 24>}, {pipeline_mode = #tpu.pipeline_mode<synchronous>, transform_indices = @transform_2, window_bounds = array<i64: 32, 1>}, {pipeline_mode = #tpu.pipeline_mode<synchronous>, transform_indices = @transform_3, window_bounds = array<i64: 32, 32>}, {pipeline_mode = #tpu.pipeline_mode<synchronous>, transform_indices = @transform_4, window_bounds = array<i64: 32, 1>}, {pipeline_mode = #tpu.pipeline_mode<synchronous>, transform_indices = @transform_5, window_bounds = array<i64: 32, 32>}, {pipeline_mode = #tpu.pipeline_mode<synchronous>, transform_indices = @transform_6, window_bounds = array<i64: 32, 1>}, {pipeline_mode = #tpu.pipeline_mode<synchronous>, transform_indices = @transform_7, window_bounds = array<i64: 32, 1>}, {pipeline_mode = #tpu.pipeline_mode<synchronous>, transform_indices = @transform_8, window_bounds = array<i64: 1, 1>}, {transform_indices = @transform_9, window_bounds = array<i64: 1, 256>}]} {
    %c0 = arith.constant 0 : index
    %c0_0 = arith.constant 0 : index
    %0 = vector.load %arg2[%c0, %c0_0] : memref<32x24xf32, #tpu.memory_space<vmem>>, vector<32x24xf32>
    %c0_1 = arith.constant 0 : index
    %c0_2 = arith.constant 0 : index
    %1 = vector.load %arg3[%c0_1, %c0_2] : memref<32x1xf32, #tpu.memory_space<vmem>>, vector<32x1xf32>
    %c0_3 = arith.constant 0 : index
    %c0_4 = arith.constant 0 : index
    %2 = vector.load %arg1[%c0_3, %c0_4] : memref<256x24xf32, #tpu.memory_space<vmem>>, vector<256x24xf32>
    %cst = arith.constant dense<0.000000e+00> : vector<32x256xf32>
    %3 = tpu.matmul %0, %2, %cst {dimension_numbers = #tpu.dot_dimension_numbers<[1], [1], [0], [0], [0, 0, 1, 0], [], []>} : vector<32x24xf32>, vector<256x24xf32>, vector<32x256xf32> -> vector<32x256xf32>
    %4 = vector.broadcast %1 : vector<32x1xf32> to vector<32x256xf32>
    %5 = arith.addf %3, %4 : vector<32x256xf32>
    %cst_5 = arith.constant 0.000000e+00 : f32
    %6 = vector.broadcast %cst_5 : f32 to vector<32x256xf32>
    %7 = arith.cmpf ogt, %5, %6 : vector<32x256xf32>
    %8 = math.exp %5 : vector<32x256xf32>
    %cst_6 = arith.constant 1.000000e+00 : f32
    %9 = vector.broadcast %cst_6 : f32 to vector<32x256xf32>
    %10 = arith.subf %8, %9 : vector<32x256xf32>
    %11 = arith.select %7, %5, %10 : vector<32x256xi1>, vector<32x256xf32>
    %c0_7 = arith.constant 0 : index
    %c0_8 = arith.constant 0 : index
    %12 = vector.load %arg4[%c0_7, %c0_8] : memref<32x32xf32, #tpu.memory_space<vmem>>, vector<32x32xf32>
    %c0_9 = arith.constant 0 : index
    %c0_10 = arith.constant 0 : index
    %13 = vector.load %arg5[%c0_9, %c0_10] : memref<32x1xf32, #tpu.memory_space<vmem>>, vector<32x1xf32>
    %cst_11 = arith.constant dense<0.000000e+00> : vector<32x256xf32>
    %14 = tpu.matmul %12, %11, %cst_11 {dimension_numbers = #tpu.dot_dimension_numbers<[1], [0], [0], [1], [0, 0, 1, 1], [], []>} : vector<32x32xf32>, vector<32x256xf32>, vector<32x256xf32> -> vector<32x256xf32>
    %15 = vector.broadcast %13 : vector<32x1xf32> to vector<32x256xf32>
    %16 = arith.addf %14, %15 : vector<32x256xf32>
    %cst_12 = arith.constant 0.000000e+00 : f32
    %17 = vector.broadcast %cst_12 : f32 to vector<32x256xf32>
    %18 = arith.cmpf ogt, %16, %17 : vector<32x256xf32>
    %19 = math.exp %16 : vector<32x256xf32>
    %cst_13 = arith.constant 1.000000e+00 : f32
    %20 = vector.broadcast %cst_13 : f32 to vector<32x256xf32>
    %21 = arith.subf %19, %20 : vector<32x256xf32>
    %22 = arith.select %18, %16, %21 : vector<32x256xi1>, vector<32x256xf32>
    %c0_14 = arith.constant 0 : index
    %c0_15 = arith.constant 0 : index
    %23 = vector.load %arg6[%c0_14, %c0_15] : memref<32x32xf32, #tpu.memory_space<vmem>>, vector<32x32xf32>
    %c0_16 = arith.constant 0 : index
    %c0_17 = arith.constant 0 : index
    %24 = vector.load %arg7[%c0_16, %c0_17] : memref<32x1xf32, #tpu.memory_space<vmem>>, vector<32x1xf32>
    %cst_18 = arith.constant dense<0.000000e+00> : vector<32x256xf32>
    %25 = tpu.matmul %23, %22, %cst_18 {dimension_numbers = #tpu.dot_dimension_numbers<[1], [0], [0], [1], [0, 0, 1, 1], [], []>} : vector<32x32xf32>, vector<32x256xf32>, vector<32x256xf32> -> vector<32x256xf32>
    %26 = vector.broadcast %24 : vector<32x1xf32> to vector<32x256xf32>
    %27 = arith.addf %25, %26 : vector<32x256xf32>
    %cst_19 = arith.constant 0.000000e+00 : f32
    %28 = vector.broadcast %cst_19 : f32 to vector<32x256xf32>
    %29 = arith.cmpf ogt, %27, %28 : vector<32x256xf32>
    %30 = math.exp %27 : vector<32x256xf32>
    %cst_20 = arith.constant 1.000000e+00 : f32
    %31 = vector.broadcast %cst_20 : f32 to vector<32x256xf32>
    %32 = arith.subf %30, %31 : vector<32x256xf32>
    %33 = arith.select %29, %27, %32 : vector<32x256xi1>, vector<32x256xf32>
    %c0_21 = arith.constant 0 : index
    %c0_22 = arith.constant 0 : index
    %34 = vector.load %arg8[%c0_21, %c0_22] : memref<32x1xf32, #tpu.memory_space<vmem>>, vector<32x1xf32>
    %35 = vector.broadcast %34 : vector<32x1xf32> to vector<32x256xf32>
    %36 = arith.mulf %33, %35 : vector<32x256xf32>
    %cst_23 = arith.constant dense<0.000000e+00> : vector<256xf32>
    %37 = vector.multi_reduction <add>, %36, %cst_23 [0] : vector<32x256xf32> to vector<256xf32>
    %38 = vector.shape_cast %37 : vector<256xf32> to vector<1x256xf32>
    %c0_24 = arith.constant 0 : index
    %c0_25 = arith.constant 0 : index
    %39 = vector.load %arg9[%c0_24, %c0_25] : memref<1x1xf32, #tpu.memory_space<vmem>>, vector<1x1xf32>
    %40 = vector.broadcast %39 : vector<1x1xf32> to vector<1x256xf32>
    %41 = arith.addf %38, %40 : vector<1x256xf32>
    %c0_26 = arith.constant 0 : index
    %c0_27 = arith.constant 0 : index
    %42 = vector.load %arg10[%c0_26, %c0_27] : memref<1x256xf32, #tpu.memory_space<vmem>>, vector<1x256xf32>
    tpu.vector_store %arg10[%c0_26, %c0_27], %41 {strides = array<i32>} : memref<1x256xf32, #tpu.memory_space<vmem>>, vector<1x256xf32>,
    return
  }
  func.func @transform_0(%arg0: i32) -> (i32, i32) {
    %c0_i32 = arith.constant 0 : i32
    %c0_i32_0 = arith.constant 0 : i32
    return %arg0, %c0_i32 : i32, i32
  }
  func.func @transform_1(%arg0: i32) -> (i32, i32) {
    %c0_i32 = arith.constant 0 : i32
    %c0_i32_0 = arith.constant 0 : i32
    %c0_i32_1 = arith.constant 0 : i32
    return %c0_i32, %c0_i32_0 : i32, i32
  }
  func.func @transform_2(%arg0: i32) -> (i32, i32) {
    %c0_i32 = arith.constant 0 : i32
    %c0_i32_0 = arith.constant 0 : i32
    %c0_i32_1 = arith.constant 0 : i32
    return %c0_i32, %c0_i32_0 : i32, i32
  }
  func.func @transform_3(%arg0: i32) -> (i32, i32) {
    %c0_i32 = arith.constant 0 : i32
    %c0_i32_0 = arith.constant 0 : i32
    %c0_i32_1 = arith.constant 0 : i32
    return %c0_i32, %c0_i32_0 : i32, i32
  }
  func.func @transform_4(%arg0: i32) -> (i32, i32) {
    %c0_i32 = arith.constant 0 : i32
    %c0_i32_0 = arith.constant 0 : i32
    %c0_i32_1 = arith.constant 0 : i32
    return %c0_i32, %c0_i32_0 : i32, i32
  }
  func.func @transform_5(%arg0: i32) -> (i32, i32) {
    %c0_i32 = arith.constant 0 : i32
    %c0_i32_0 = arith.constant 0 : i32
    %c0_i32_1 = arith.constant 0 : i32
    return %c0_i32, %c0_i32_0 : i32, i32
  }
  func.func @transform_6(%arg0: i32) -> (i32, i32) {
    %c0_i32 = arith.constant 0 : i32
    %c0_i32_0 = arith.constant 0 : i32
    %c0_i32_1 = arith.constant 0 : i32
    return %c0_i32, %c0_i32_0 : i32, i32
  }
  func.func @transform_7(%arg0: i32) -> (i32, i32) {
    %c0_i32 = arith.constant 0 : i32
    %c0_i32_0 = arith.constant 0 : i32
    %c0_i32_1 = arith.constant 0 : i32
    return %c0_i32, %c0_i32_0 : i32, i32
  }
  func.func @transform_8(%arg0: i32) -> (i32, i32) {
    %c0_i32 = arith.constant 0 : i32
    %c0_i32_0 = arith.constant 0 : i32
    %c0_i32_1 = arith.constant 0 : i32
    return %c0_i32, %c0_i32_0 : i32, i32
  }
  func.func @transform_9(%arg0: i32) -> (i32, i32) {
    %c0_i32 = arith.constant 0 : i32
    %c0_i32_0 = arith.constant 0 : i32
    return %c0_i32, %arg0 : i32, i32
  }
}

</mosaic_0001>

<llo_original>
// kernel: mlp3newft_forward.1
$region0: #{mlp3newft_forward.1}
  #allocation0 [shape = 'u32[]', space=smem, size = 0x4, offset = 0x4, fixed_abs, tag = 'smem constant byte address 0x4 - core index']
  #allocation1 [shape = 'u32[144,128]{1,0:T(1,128)}', space=vmem, size = 0x12000, scoped, tag = 'internal scratch']
  #allocation2 [shape = 'f32[1,1]{1,0:T(1,128)S(1)}', space=vmem, size = 0x200, scoped, tag = 'scoped memory for mlp3newft_forward.1']
  %s0 = inlined_call_operand.vmem [shape: f32[256,24], index: 0, kind: input, shape index: {}]
  %s1 = inlined_call_operand.vmem [shape: f32[32,24], index: 1, kind: input, shape index: {}]
  %s2 = inlined_call_operand.vmem [shape: f32[32,1], index: 2, kind: input, shape index: {}]
  %s3 = inlined_call_operand.vmem [shape: f32[32,32], index: 3, kind: input, shape index: {}]
  %s4 = inlined_call_operand.vmem [shape: f32[32,1], index: 4, kind: input, shape index: {}]
  %s5 = inlined_call_operand.vmem [shape: f32[32,32], index: 5, kind: input, shape index: {}]
  %s6 = inlined_call_operand.vmem [shape: f32[32,1], index: 6, kind: input, shape index: {}]
  %s7 = inlined_call_operand.vmem [shape: f32[32,1], index: 7, kind: input, shape index: {}]
  %s8 = inlined_call_operand.<no memory space> [shape: f32[1,1], index: 8, kind: input, shape index: {}]
  %s9 = inlined_call_operand.hbm [shape: f32[1,256], index: 9, kind: output, shape index: {}]
  %s10 = sld [smem:[#allocation0]]
  $region46: #{mlp3newft_forward.1} parent=0
    _
  %s12 = ssub.s32 1, %s10
  %s13 = scalar_select 0, %s12, %s10
  %v14 = vstv %s8
  %15 = vst [vmem:[#allocation2] sm:$0x1] %v14
  $region1: #{mlp3newft_forward.1} parent=0
    #allocation3 [shape = 'u8[1024]{0}', space=vmem, size = 0x400, scoped, tag = 'output window, operand 0, single buffered']
    #allocation4 [shape = 's32[1]{0}', space=sflag, size = 0x4, scoped, tag = 'scoped memory for mlp3newft_forward.1']
    %16 = vsyncpa [#allocation4], 0
    // Predicated region
    $region2: #{mlp3newft_forward.1} parent=1 // pred_check
      _
    $region3: #{mlp3newft_forward.1} parent=1 // pred_check_branch
      %18 = sbr.rel (0) target = $region5
    $region4: #{mlp3newft_forward.1} parent=1 // pred_region
      _
    $region5: #{mlp3newft_forward.1} parent=1 // pred_fallthru
      _
    // Predicated region
    $region6: #{mlp3newft_forward.1} parent=1 // pred_check
      _
    $region7: #{mlp3newft_forward.1} parent=1 // pred_check_branch
      %20 = sbr.rel (0) target = $region9
    $region8: #{mlp3newft_forward.1} parent=1 // pred_region
      _
    $region9: #{mlp3newft_forward.1} parent=1 // pred_fallthru
      _
    // Predicated region
    $region10: #{mlp3newft_forward.1} parent=1 // pred_check
      _
    $region11: #{mlp3newft_forward.1} parent=1 // pred_check_branch
      %22 = sbr.rel (0) target = $region13
    $region12: #{mlp3newft_forward.1} parent=1 // pred_region
      _
    $region13: #{mlp3newft_forward.1} parent=1 // pred_fallthru
      _
    // Predicated region
    $region14: #{mlp3newft_forward.1} parent=1 // pred_check
      _
    $region15: #{mlp3newft_forward.1} parent=1 // pred_check_branch
      %24 = sbr.rel (0) target = $region17
    $region16: #{mlp3newft_forward.1} parent=1 // pred_region
      _
    $region17: #{mlp3newft_forward.1} parent=1 // pred_fallthru
      _
    // Predicated region
    $region18: #{mlp3newft_forward.1} parent=1 // pred_check
      _
    $region19: #{mlp3newft_forward.1} parent=1 // pred_check_branch
      %26 = sbr.rel (0) target = $region21
    $region20: #{mlp3newft_forward.1} parent=1 // pred_region
      _
    $region21: #{mlp3newft_forward.1} parent=1 // pred_fallthru
      _
    // Predicated region
    $region22: #{mlp3newft_forward.1} parent=1 // pred_check
      _
    $region23: #{mlp3newft_forward.1} parent=1 // pred_check_branch
      %28 = sbr.rel (0) target = $region25
    $region24: #{mlp3newft_forward.1} parent=1 // pred_region
      _
    $region25: #{mlp3newft_forward.1} parent=1 // pred_fallthru
      _
    // Predicated region
    $region26: #{mlp3newft_forward.1} parent=1 // pred_check
      _
    $region27: #{mlp3newft_forward.1} parent=1 // pred_check_branch
      %30 = sbr.rel (0) target = $region29
    $region28: #{mlp3newft_forward.1} parent=1 // pred_region
      _
    $region29: #{mlp3newft_forward.1} parent=1 // pred_fallthru
      _
    // Predicated region
    $region30: #{mlp3newft_forward.1} parent=1 // pred_check
      _
    $region31: #{mlp3newft_forward.1} parent=1 // pred_check_branch
      %32 = sbr.rel (0) target = $region33
    $region32: #{mlp3newft_forward.1} parent=1 // pred_region
      _
    $region33: #{mlp3newft_forward.1} parent=1 // pred_fallthru
      _
    // Predicated region
    $region34: #{mlp3newft_forward.1} parent=1 // pred_check
      _
    $region35: #{mlp3newft_forward.1} parent=1 // pred_check_branch
      %34 = sbr.rel (0) target = $region37
    $region36: #{mlp3newft_forward.1} parent=1 // pred_region
      _
    $region37: #{mlp3newft_forward.1} parent=1 // pred_fallthru
      _
    %v35 = vld [vmem:[%s1] sm:$0xff]
    %v36 = vld [vmem:[%s1 + $0x8] sm:$0xff]
    %v37 = vld [vmem:[%s1 + $0x10] sm:$0xff]
    %v38 = vld [vmem:[%s1 + $0x18] sm:$0xff]
    %v39 = vld [vmem:[%s2] sm:$0xff]
    %v40 = vld [vmem:[%s2 + $0x8] sm:$0xff]
    %v41 = vld [vmem:[%s2 + $0x10] sm:$0xff]
    %v42 = vld [vmem:[%s2 + $0x18] sm:$0xff]
    %v43 = vld [vmem:[%s0] sm:$0xff]
    %v44 = vld [vmem:[%s0 + $0x8] sm:$0xff]
    %v45 = vld [vmem:[%s0 + $0x10] sm:$0xff]
    %v46 = vld [vmem:[%s0 + $0x18] sm:$0xff]
    %v47 = vld [vmem:[%s0 + $0x20] sm:$0xff]
    %v48 = vld [vmem:[%s0 + $0x28] sm:$0xff]
    %v49 = vld [vmem:[%s0 + $0x30] sm:$0xff]
    %v50 = vld [vmem:[%s0 + $0x38] sm:$0xff]
    %v51 = vld [vmem:[%s0 + $0x40] sm:$0xff]
    %v52 = vld [vmem:[%s0 + $0x48] sm:$0xff]
    %v53 = vld [vmem:[%s0 + $0x50] sm:$0xff]
    %v54 = vld [vmem:[%s0 + $0x58] sm:$0xff]
    %v55 = vld [vmem:[%s0 + $0x60] sm:$0xff]
    %v56 = vld [vmem:[%s0 + $0x68] sm:$0xff]
    %v57 = vld [vmem:[%s0 + $0x70] sm:$0xff]
    %v58 = vld [vmem:[%s0 + $0x78] sm:$0xff]
    %v59 = vld [vmem:[%s0 + $0x80] sm:$0xff]
    %v60 = vld [vmem:[%s0 + $0x88] sm:$0xff]
    %v61 = vld [vmem:[%s0 + $0x90] sm:$0xff]
    %v62 = vld [vmem:[%s0 + $0x98] sm:$0xff]
    %v63 = vld [vmem:[%s0 + $0xa0] sm:$0xff]
    %v64 = vld [vmem:[%s0 + $0xa8] sm:$0xff]
    %v65 = vld [vmem:[%s0 + $0xb0] sm:$0xff]
    %v66 = vld [vmem:[%s0 + $0xb8] sm:$0xff]
    %v67 = vld [vmem:[%s0 + $0xc0] sm:$0xff]
    %v68 = vld [vmem:[%s0 + $0xc8] sm:$0xff]
    %v69 = vld [vmem:[%s0 + $0xd0] sm:$0xff]
    %v70 = vld [vmem:[%s0 + $0xd8] sm:$0xff]
    %v71 = vld [vmem:[%s0 + $0xe0] sm:$0xff]
    %v72 = vld [vmem:[%s0 + $0xe8] sm:$0xff]
    %v73 = vld [vmem:[%s0 + $0xf0] sm:$0xff]
    %v74 = vld [vmem:[%s0 + $0xf8] sm:$0xff]
    %76 = vset.pattern.permute.xlu0 0
    %77 = vperm.xlu0 %76, %v39
    %v78 = vpop.permute.xlu0 %77
    %81 = vset.pattern.permute.xlu0 0
    %82 = vperm.xlu0 %81, %v40
    %v83 = vpop.permute.xlu0 %82
    %86 = vset.pattern.permute.xlu0 0
    %87 = vperm.xlu0 %86, %v41
    %v88 = vpop.permute.xlu0 %87
    %91 = vset.pattern.permute.xlu0 0
    %92 = vperm.xlu0 %91, %v42
    %v93 = vpop.permute.xlu0 %92
    %vm95 = vcmask 195584
    %v97 = vsel %vm95, %v35, 0
    %v100 = vsel %vm95, %v36, 0
    %v103 = vsel %vm95, %v37, 0
    %v106 = vsel %vm95, %v38, 0
    %v109 = vsel %vm95, %v43, 0
    %v112 = vsel %vm95, %v44, 0
    %v115 = vsel %vm95, %v45, 0
    %v118 = vsel %vm95, %v46, 0
    %v121 = vsel %vm95, %v47, 0
    %v124 = vsel %vm95, %v48, 0
    %v127 = vsel %vm95, %v49, 0
    %v130 = vsel %vm95, %v50, 0
    %v133 = vsel %vm95, %v51, 0
    %v136 = vsel %vm95, %v52, 0
    %v139 = vsel %vm95, %v53, 0
    %v142 = vsel %vm95, %v54, 0
    %v145 = vsel %vm95, %v55, 0
    %v148 = vsel %vm95, %v56, 0
    %v151 = vsel %vm95, %v57, 0
    %v154 = vsel %vm95, %v58, 0
    %v157 = vsel %vm95, %v59, 0
    %v160 = vsel %vm95, %v60, 0
    %v163 = vsel %vm95, %v61, 0
    %v166 = vsel %vm95, %v62, 0
    %v169 = vsel %vm95, %v63, 0
    %v172 = vsel %vm95, %v64, 0
    %v175 = vsel %vm95, %v65, 0
    %v178 = vsel %vm95, %v66, 0
    %v181 = vsel %vm95, %v67, 0
    %v184 = vsel %vm95, %v68, 0
    %v187 = vsel %vm95, %v69, 0
    %v190 = vsel %vm95, %v70, 0
    %v193 = vsel %vm95, %v71, 0
    %v196 = vsel %vm95, %v72, 0
    %v199 = vsel %vm95, %v73, 0
    %v202 = vsel %vm95, %v74, 0
    %204 = vmatprep.subr.mxu0 0.0
    %205 = vmatpush1.xpose.msra.mxu0 %v154
    %206 = vmatprep.subr.mxu0 0.0
    %207 = vmatpush1.xpose.msra.mxu0 %v151
    %208 = vmatprep.subr.mxu0 0.0
    %209 = vmatpush1.xpose.msra.mxu0 %v148
    %210 = vmatprep.subr.mxu0 0.0
    %211 = vmatpush1.xpose.msra.mxu0 %v145
    %212 = vmatprep.subr.mxu0 0.0
    %213 = vmatpush1.xpose.msra.mxu0 %v142
    %214 = vmatprep.subr.mxu0 0.0
    %215 = vmatpush1.xpose.msra.mxu0 %v139
    %216 = vmatprep.subr.mxu0 0.0
    %217 = vmatpush1.xpose.msra.mxu0 %v136
    %218 = vmatprep.subr.mxu0 0.0
    %219 = vmatpush1.xpose.msra.mxu0 %v133
    %220 = vmatprep.subr.mxu0 0.0
    %221 = vmatpush1.xpose.msra.mxu0 %v130
    %222 = vmatprep.subr.mxu0 0.0
    %223 = vmatpush1.xpose.msra.mxu0 %v127
    %224 = vmatprep.subr.mxu0 0.0
    %225 = vmatpush1.xpose.msra.mxu0 %v124
    %226 = vmatprep.subr.mxu0 0.0
    %227 = vmatpush1.xpose.msra.mxu0 %v121
    %228 = vmatprep.subr.mxu0 0.0
    %229 = vmatpush1.xpose.msra.mxu0 %v118
    %230 = vmatprep.subr.mxu0 0.0
    %231 = vmatpush1.xpose.msra.mxu0 %v115
    %232 = vmatprep.subr.mxu0 0.0
    %233 = vmatpush1.xpose.msra.mxu0 %v112
    %234 = vmatprep.subr.mxu0 0.0
    %235 = vmatpush1.xpose.msra.mxu0 %v109
    %236 = vmatprep.subr.mxu0 0.0
    %237 = vmatpush2.xpose.msra.mxu0 %v202
    %238 = vmatprep.subr.mxu0 0.0
    %239 = vmatpush2.xpose.msra.mxu0 %v199
    %240 = vmatprep.subr.mxu0 0.0
    %241 = vmatpush2.xpose.msra.mxu0 %v196
    %242 = vmatprep.subr.mxu0 0.0
    %243 = vmatpush2.xpose.msra.mxu0 %v193
    %244 = vmatprep.subr.mxu0 0.0
    %245 = vmatpush2.xpose.msra.mxu0 %v190
    %246 = vmatprep.subr.mxu0 0.0
    %247 = vmatpush2.xpose.msra.mxu0 %v187
    %248 = vmatprep.subr.mxu0 0.0
    %249 = vmatpush2.xpose.msra.mxu0 %v184
    %250 = vmatprep.subr.mxu0 0.0
    %251 = vmatpush2.xpose.msra.mxu0 %v181
    %252 = vmatprep.subr.mxu0 0.0
    %253 = vmatpush2.xpose.msra.mxu0 %v178
    %254 = vmatprep.subr.mxu0 0.0
    %255 = vmatpush2.xpose.msra.mxu0 %v175
    %256 = vmatprep.subr.mxu0 0.0
    %257 = vmatpush2.xpose.msra.mxu0 %v172
    %258 = vmatprep.subr.mxu0 0.0
    %259 = vmatpush2.xpose.msra.mxu0 %v169
    %260 = vmatprep.subr.mxu0 0.0
    %261 = vmatpush2.xpose.msra.mxu0 %v166
    %262 = vmatprep.subr.mxu0 0.0
    %263 = vmatpush2.xpose.msra.mxu0 %v163
    %264 = vmatprep.subr.mxu0 0.0
    %265 = vmatpush2.xpose.msra.mxu0 %v160
    %266 = vmatprep.subr.mxu0 0.0
    %267 = vmatpush2.xpose.msra.mxu0 %v157
    %268 = vmatprep.mubr.f32.mxu0 0.0
    %269 = vmatmul.mubr.f32.gmra.mxu0 %v97
    %v270 = vpop.f32.mrf.mxu0
    %v271 = vadd.f32 %v78, %v270
    %v272 = vpop.f32.mrf.mxu0
    %v273 = vadd.f32 %v78, %v272
    %274 = vmatprep.mubr.f32.mxu0 0.0
    %275 = vmatmul.mubr.f32.gmra.mxu0 %v100
    %v276 = vpop.f32.mrf.mxu0
    %v277 = vadd.f32 %v83, %v276
    %v278 = vpop.f32.mrf.mxu0
    %v279 = vadd.f32 %v83, %v278
    %280 = vmatprep.mubr.f32.mxu0 0.0
    %281 = vmatmul.mubr.f32.gmra.mxu0 %v103
    %v282 = vpop.f32.mrf.mxu0
    %v283 = vadd.f32 %v88, %v282
    %v284 = vpop.f32.mrf.mxu0
    %v285 = vadd.f32 %v88, %v284
    %286 = vmatprep.mubr.f32.mxu0 0.0
    %287 = vmatmul.mubr.f32.gmra.mxu0 %v106
    %v288 = vpop.f32.mrf.mxu0
    %v289 = vadd.f32 %v93, %v288
    %v290 = vpop.f32.mrf.mxu0
    %v291 = vadd.f32 %v93, %v290
    %292 = vdwg.mxu0
    %vm293 = vcmp.gt.f32.partialorder %v271, 0.0
    %vm294 = vcmp.gt.f32.partialorder %v273, 0.0
    %vm295 = vcmp.gt.f32.partialorder %v277, 0.0
    %vm296 = vcmp.gt.f32.partialorder %v279, 0.0
    %vm297 = vcmp.gt.f32.partialorder %v283, 0.0
    %vm298 = vcmp.gt.f32.partialorder %v285, 0.0
    %vm299 = vcmp.gt.f32.partialorder %v289, 0.0
    %vm300 = vcmp.gt.f32.partialorder %v291, 0.0
    %v301 = vmul.f32 %v271, 1.442695
    %v302 = vpow.pop %v301
    %v303 = vmul.f32 %v273, 1.442695
    %v304 = vpow.pop %v303
    %v305 = vmul.f32 %v277, 1.442695
    %v306 = vpow.pop %v305
    %v307 = vmul.f32 %v279, 1.442695
    %v308 = vpow.pop %v307
    %v309 = vmul.f32 %v283, 1.442695
    %v310 = vpow.pop %v309
    %v311 = vmul.f32 %v285, 1.442695
    %v312 = vpow.pop %v311
    %v313 = vmul.f32 %v289, 1.442695
    %v314 = vpow.pop %v313
    %v315 = vmul.f32 %v291, 1.442695
    %v316 = vpow.pop %v315
    %v317 = vsub.f32 %v302, 1.0
    %v318 = vsub.f32 %v304, 1.0
    %v319 = vsub.f32 %v306, 1.0
    %v320 = vsub.f32 %v308, 1.0
    %v321 = vsub.f32 %v310, 1.0
    %v322 = vsub.f32 %v312, 1.0
    %v323 = vsub.f32 %v314, 1.0
    %v324 = vsub.f32 %v316, 1.0
    %v325 = vsel %vm293, %v271, %v317
    %v326 = vsel %vm294, %v273, %v318
    %v327 = vsel %vm295, %v277, %v319
    %v328 = vsel %vm296, %v279, %v320
    %v329 = vsel %vm297, %v283, %v321
    %v330 = vsel %vm298, %v285, %v322
    %v331 = vsel %vm299, %v289, %v323
    %v332 = vsel %vm300, %v291, %v324
    %v333 = vld [vmem:[%s3] sm:$0xff]
    %v334 = vld [vmem:[%s3 + $0x8] sm:$0xff]
    %v335 = vld [vmem:[%s3 + $0x10] sm:$0xff]
    %v336 = vld [vmem:[%s3 + $0x18] sm:$0xff]
    %v337 = vld [vmem:[%s4] sm:$0xff]
    %v338 = vld [vmem:[%s4 + $0x8] sm:$0xff]
    %v339 = vld [vmem:[%s4 + $0x10] sm:$0xff]
    %v340 = vld [vmem:[%s4 + $0x18] sm:$0xff]
    %342 = vset.pattern.permute.xlu0 0
    %343 = vperm.xlu0 %342, %v337
    %v344 = vpop.permute.xlu0 %343
    %347 = vset.pattern.permute.xlu0 0
    %348 = vperm.xlu0 %347, %v338
    %v349 = vpop.permute.xlu0 %348
    %352 = vset.pattern.permute.xlu0 0
    %353 = vperm.xlu0 %352, %v339
    %v354 = vpop.permute.xlu0 %353
    %357 = vset.pattern.permute.xlu0 0
    %358 = vperm.xlu0 %357, %v340
    %v359 = vpop.permute.xlu0 %358
    %vm361 = vcmask 261120
    %v363 = vsel %vm361, %v333, 0
    %v366 = vsel %vm361, %v334, 0
    %v369 = vsel %vm361, %v335, 0
    %v372 = vsel %vm361, %v336, 0
    %374 = vmatprep.subr.mxu0 0.0
    %375 = vmatpush1.msra.mxu0 0.0
    %376 = vmatprep.subr.mxu0 0.0
    %377 = vmatpush1.msra.mxu0 0.0
    %378 = vmatprep.subr.mxu0 0.0
    %379 = vmatpush1.msra.mxu0 0.0
    %380 = vmatprep.subr.mxu0 0.0
    %381 = vmatpush1.msra.mxu0 0.0
    %382 = vmatprep.subr.mxu0 0.0
    %383 = vmatpush1.msra.mxu0 0.0
    %384 = vmatprep.subr.mxu0 0.0
    %385 = vmatpush1.msra.mxu0 0.0
    %386 = vmatprep.subr.mxu0 0.0
    %387 = vmatpush1.msra.mxu0 0.0
    %388 = vmatprep.subr.mxu0 0.0
    %389 = vmatpush1.msra.mxu0 0.0
    %390 = vmatprep.subr.mxu0 0.0
    %391 = vmatpush1.msra.mxu0 0.0
    %392 = vmatprep.subr.mxu0 0.0
    %393 = vmatpush1.msra.mxu0 0.0
    %394 = vmatprep.subr.mxu0 0.0
    %395 = vmatpush1.msra.mxu0 0.0
    %396 = vmatprep.subr.mxu0 0.0
    %397 = vmatpush1.msra.mxu0 0.0
    %398 = vmatprep.subr.mxu0 %v332
    %399 = vmatpush1.msra.mxu0 %v331
    %400 = vmatprep.subr.mxu0 %v330
    %401 = vmatpush1.msra.mxu0 %v329
    %402 = vmatprep.subr.mxu0 %v328
    %403 = vmatpush1.msra.mxu0 %v327
    %404 = vmatprep.subr.mxu0 %v326
    %405 = vmatpush1.msra.mxu0 %v325
    %406 = vmatprep.subr.mxu0 0.0
    %407 = vmatpush2.msra.mxu0 0.0
    %408 = vmatprep.subr.mxu0 0.0
    %409 = vmatpush2.msra.mxu0 0.0
    %410 = vmatprep.subr.mxu0 0.0
    %411 = vmatpush2.msra.mxu0 0.0
    %412 = vmatprep.subr.mxu0 0.0
    %413 = vmatpush2.msra.mxu0 0.0
    %414 = vmatprep.subr.mxu0 0.0
    %415 = vmatpush2.msra.mxu0 0.0
    %416 = vmatprep.subr.mxu0 0.0
    %417 = vmatpush2.msra.mxu0 0.0
    %418 = vmatprep.subr.mxu0 0.0
    %419 = vmatpush2.msra.mxu0 0.0
    %420 = vmatprep.subr.mxu0 0.0
    %421 = vmatpush2.msra.mxu0 0.0
    %422 = vmatprep.subr.mxu0 0.0
    %423 = vmatpush2.msra.mxu0 0.0
    %424 = vmatprep.subr.mxu0 0.0
    %425 = vmatpush2.msra.mxu0 0.0
    %426 = vmatprep.subr.mxu0 0.0
    %427 = vmatpush2.msra.mxu0 0.0
    %428 = vmatprep.subr.mxu0 0.0
    %429 = vmatpush2.msra.mxu0 0.0
    %430 = vmatprep.subr.mxu0 0.0
    %431 = vmatpush2.msra.mxu0 0.0
    %432 = vmatprep.subr.mxu0 0.0
    %433 = vmatpush2.msra.mxu0 0.0
    %434 = vmatprep.subr.mxu0 0.0
    %435 = vmatpush2.msra.mxu0 0.0
    %436 = vmatprep.subr.mxu0 0.0
    %437 = vmatpush2.msra.mxu0 0.0
    %438 = vmatprep.mubr.f32.mxu0 0.0
    %439 = vmatmul.mubr.f32.gmra.mxu0 %v363
    %v440 = vpop.f32.mrf.mxu0
    %v441 = vadd.f32 %v344, %v440
    %v442 = vpop.f32.mrf.mxu0
    %v443 = vadd.f32 %v344, %v442
    %444 = vmatprep.mubr.f32.mxu0 0.0
    %445 = vmatmul.mubr.f32.gmra.mxu0 %v366
    %v446 = vpop.f32.mrf.mxu0
    %v447 = vadd.f32 %v349, %v446
    %v448 = vpop.f32.mrf.mxu0
    %v449 = vadd.f32 %v349, %v448
    %450 = vmatprep.mubr.f32.mxu0 0.0
    %451 = vmatmul.mubr.f32.gmra.mxu0 %v369
    %v452 = vpop.f32.mrf.mxu0
    %v453 = vadd.f32 %v354, %v452
    %v454 = vpop.f32.mrf.mxu0
    %v455 = vadd.f32 %v354, %v454
    %456 = vmatprep.mubr.f32.mxu0 0.0
    %457 = vmatmul.mubr.f32.gmra.mxu0 %v372
    %v458 = vpop.f32.mrf.mxu0
    %v459 = vadd.f32 %v359, %v458
    %v460 = vpop.f32.mrf.mxu0
    %v461 = vadd.f32 %v359, %v460
    %462 = vdwg.mxu0
    %vm463 = vcmp.gt.f32.partialorder %v441, 0.0
    %vm464 = vcmp.gt.f32.partialorder %v443, 0.0
    %vm465 = vcmp.gt.f32.partialorder %v447, 0.0
    %vm466 = vcmp.gt.f32.partialorder %v449, 0.0
    %vm467 = vcmp.gt.f32.partialorder %v453, 0.0
    %vm468 = vcmp.gt.f32.partialorder %v455, 0.0
    %vm469 = vcmp.gt.f32.partialorder %v459, 0.0
    %vm470 = vcmp.gt.f32.partialorder %v461, 0.0
    %v471 = vmul.f32 %v441, 1.442695
    %v472 = vpow.pop %v471
    %v473 = vmul.f32 %v443, 1.442695
    %v474 = vpow.pop %v473
    %v475 = vmul.f32 %v447, 1.442695
    %v476 = vpow.pop %v475
    %v477 = vmul.f32 %v449, 1.442695
    %v478 = vpow.pop %v477
    %v479 = vmul.f32 %v453, 1.442695
    %v480 = vpow.pop %v479
    %v481 = vmul.f32 %v455, 1.442695
    %v482 = vpow.pop %v481
    %v483 = vmul.f32 %v459, 1.442695
    %v484 = vpow.pop %v483
    %v485 = vmul.f32 %v461, 1.442695
    %v486 = vpow.pop %v485
    %v487 = vsub.f32 %v472, 1.0
    %v488 = vsub.f32 %v474, 1.0
    %v489 = vsub.f32 %v476, 1.0
    %v490 = vsub.f32 %v478, 1.0
    %v491 = vsub.f32 %v480, 1.0
    %v492 = vsub.f32 %v482, 1.0
    %v493 = vsub.f32 %v484, 1.0
    %v494 = vsub.f32 %v486, 1.0
    %v495 = vsel %vm463, %v441, %v487
    %v496 = vsel %vm464, %v443, %v488
    %v497 = vsel %vm465, %v447, %v489
    %v498 = vsel %vm466, %v449, %v490
    %v499 = vsel %vm467, %v453, %v491
    %v500 = vsel %vm468, %v455, %v492
    %v501 = vsel %vm469, %v459, %v493
    %v502 = vsel %vm470, %v461, %v494
    %v503 = vld [vmem:[%s5] sm:$0xff]
    %v504 = vld [vmem:[%s5 + $0x8] sm:$0xff]
    %v505 = vld [vmem:[%s5 + $0x10] sm:$0xff]
    %v506 = vld [vmem:[%s5 + $0x18] sm:$0xff]
    %v507 = vld [vmem:[%s6] sm:$0xff]
    %v508 = vld [vmem:[%s6 + $0x8] sm:$0xff]
    %v509 = vld [vmem:[%s6 + $0x10] sm:$0xff]
    %v510 = vld [vmem:[%s6 + $0x18] sm:$0xff]
    %512 = vset.pattern.permute.xlu0 0
    %513 = vperm.xlu0 %512, %v507
    %v514 = vpop.permute.xlu0 %513
    %517 = vset.pattern.permute.xlu0 0
    %518 = vperm.xlu0 %517, %v508
    %v519 = vpop.permute.xlu0 %518
    %522 = vset.pattern.permute.xlu0 0
    %523 = vperm.xlu0 %522, %v509
    %v524 = vpop.permute.xlu0 %523
    %527 = vset.pattern.permute.xlu0 0
    %528 = vperm.xlu0 %527, %v510
    %v529 = vpop.permute.xlu0 %528
    %v532 = vsel %vm361, %v503, 0
    %v535 = vsel %vm361, %v504, 0
    %v538 = vsel %vm361, %v505, 0
    %v541 = vsel %vm361, %v506, 0
    %543 = vmatprep.subr.mxu0 0.0
    %544 = vmatpush1.msra.mxu0 0.0
    %545 = vmatprep.subr.mxu0 0.0
    %546 = vmatpush1.msra.mxu0 0.0
    %547 = vmatprep.subr.mxu0 0.0
    %548 = vmatpush1.msra.mxu0 0.0
    %549 = vmatprep.subr.mxu0 0.0
    %550 = vmatpush1.msra.mxu0 0.0
    %551 = vmatprep.subr.mxu0 0.0
    %552 = vmatpush1.msra.mxu0 0.0
    %553 = vmatprep.subr.mxu0 0.0
    %554 = vmatpush1.msra.mxu0 0.0
    %555 = vmatprep.subr.mxu0 0.0
    %556 = vmatpush1.msra.mxu0 0.0
    %557 = vmatprep.subr.mxu0 0.0
    %558 = vmatpush1.msra.mxu0 0.0
    %559 = vmatprep.subr.mxu0 0.0
    %560 = vmatpush1.msra.mxu0 0.0
    %561 = vmatprep.subr.mxu0 0.0
    %562 = vmatpush1.msra.mxu0 0.0
    %563 = vmatprep.subr.mxu0 0.0
    %564 = vmatpush1.msra.mxu0 0.0
    %565 = vmatprep.subr.mxu0 0.0
    %566 = vmatpush1.msra.mxu0 0.0
    %567 = vmatprep.subr.mxu0 %v502
    %568 = vmatpush1.msra.mxu0 %v501
    %569 = vmatprep.subr.mxu0 %v500
    %570 = vmatpush1.msra.mxu0 %v499
    %571 = vmatprep.subr.mxu0 %v498
    %572 = vmatpush1.msra.mxu0 %v497
    %573 = vmatprep.subr.mxu0 %v496
    %574 = vmatpush1.msra.mxu0 %v495
    %575 = vmatprep.subr.mxu0 0.0
    %576 = vmatpush2.msra.mxu0 0.0
    %577 = vmatprep.subr.mxu0 0.0
    %578 = vmatpush2.msra.mxu0 0.0
    %579 = vmatprep.subr.mxu0 0.0
    %580 = vmatpush2.msra.mxu0 0.0
    %581 = vmatprep.subr.mxu0 0.0
    %582 = vmatpush2.msra.mxu0 0.0
    %583 = vmatprep.subr.mxu0 0.0
    %584 = vmatpush2.msra.mxu0 0.0
    %585 = vmatprep.subr.mxu0 0.0
    %586 = vmatpush2.msra.mxu0 0.0
    %587 = vmatprep.subr.mxu0 0.0
    %588 = vmatpush2.msra.mxu0 0.0
    %589 = vmatprep.subr.mxu0 0.0
    %590 = vmatpush2.msra.mxu0 0.0
    %591 = vmatprep.subr.mxu0 0.0
    %592 = vmatpush2.msra.mxu0 0.0
    %593 = vmatprep.subr.mxu0 0.0
    %594 = vmatpush2.msra.mxu0 0.0
    %595 = vmatprep.subr.mxu0 0.0
    %596 = vmatpush2.msra.mxu0 0.0
    %597 = vmatprep.subr.mxu0 0.0
    %598 = vmatpush2.msra.mxu0 0.0
    %599 = vmatprep.subr.mxu0 0.0
    %600 = vmatpush2.msra.mxu0 0.0
    %601 = vmatprep.subr.mxu0 0.0
    %602 = vmatpush2.msra.mxu0 0.0
    %603 = vmatprep.subr.mxu0 0.0
    %604 = vmatpush2.msra.mxu0 0.0
    %605 = vmatprep.subr.mxu0 0.0
    %606 = vmatpush2.msra.mxu0 0.0
    %607 = vmatprep.mubr.f32.mxu0 0.0
    %608 = vmatmul.mubr.f32.gmra.mxu0 %v532
    %v609 = vpop.f32.mrf.mxu0
    %v610 = vadd.f32 %v514, %v609
    %v611 = vpop.f32.mrf.mxu0
    %v612 = vadd.f32 %v514, %v611
    %613 = vmatprep.mubr.f32.mxu0 0.0
    %614 = vmatmul.mubr.f32.gmra.mxu0 %v535
    %v615 = vpop.f32.mrf.mxu0
    %v616 = vadd.f32 %v519, %v615
    %v617 = vpop.f32.mrf.mxu0
    %v618 = vadd.f32 %v519, %v617
    %619 = vmatprep.mubr.f32.mxu0 0.0
    %620 = vmatmul.mubr.f32.gmra.mxu0 %v538
    %v621 = vpop.f32.mrf.mxu0
    %v622 = vadd.f32 %v524, %v621
    %v623 = vpop.f32.mrf.mxu0
    %v624 = vadd.f32 %v524, %v623
    %625 = vmatprep.mubr.f32.mxu0 0.0
    %626 = vmatmul.mubr.f32.gmra.mxu0 %v541
    %v627 = vpop.f32.mrf.mxu0
    %v628 = vadd.f32 %v529, %v627
    %v629 = vpop.f32.mrf.mxu0
    %v630 = vadd.f32 %v529, %v629
    %631 = vdwg.mxu0
    %vm632 = vcmp.gt.f32.partialorder %v610, 0.0
    %vm633 = vcmp.gt.f32.partialorder %v612, 0.0
    %vm634 = vcmp.gt.f32.partialorder %v616, 0.0
    %vm635 = vcmp.gt.f32.partialorder %v618, 0.0
    %vm636 = vcmp.gt.f32.partialorder %v622, 0.0
    %vm637 = vcmp.gt.f32.partialorder %v624, 0.0
    %vm638 = vcmp.gt.f32.partialorder %v628, 0.0
    %vm639 = vcmp.gt.f32.partialorder %v630, 0.0
    %v640 = vmul.f32 %v610, 1.442695
    %v641 = vpow.pop %v640
    %v642 = vmul.f32 %v612, 1.442695
    %v643 = vpow.pop %v642
    %v644 = vmul.f32 %v616, 1.442695
    %v645 = vpow.pop %v644
    %v646 = vmul.f32 %v618, 1.442695
    %v647 = vpow.pop %v646
    %v648 = vmul.f32 %v622, 1.442695
    %v649 = vpow.pop %v648
    %v650 = vmul.f32 %v624, 1.442695
    %v651 = vpow.pop %v650
    %v652 = vmul.f32 %v628, 1.442695
    %v653 = vpow.pop %v652
    %v654 = vmul.f32 %v630, 1.442695
    %v655 = vpow.pop %v654
    %v656 = vsub.f32 %v641, 1.0
    %v657 = vsub.f32 %v643, 1.0
    %v658 = vsub.f32 %v645, 1.0
    %v659 = vsub.f32 %v647, 1.0
    %v660 = vsub.f32 %v649, 1.0
    %v661 = vsub.f32 %v651, 1.0
    %v662 = vsub.f32 %v653, 1.0
    %v663 = vsub.f32 %v655, 1.0
    %v664 = vsel %vm632, %v610, %v656
    %v665 = vsel %vm633, %v612, %v657
    %v666 = vsel %vm634, %v616, %v658
    %v667 = vsel %vm635, %v618, %v659
    %v668 = vsel %vm636, %v622, %v660
    %v669 = vsel %vm637, %v624, %v661
    %v670 = vsel %vm638, %v628, %v662
    %v671 = vsel %vm639, %v630, %v663
    %v672 = vld [vmem:[%s7] sm:$0xff]
    %v673 = vld [vmem:[%s7 + $0x8] sm:$0xff]
    %v674 = vld [vmem:[%s7 + $0x10] sm:$0xff]
    %v675 = vld [vmem:[%s7 + $0x18] sm:$0xff]
    %677 = vset.pattern.permute.xlu0 0
    %678 = vperm.xlu0 %677, %v672
    %v679 = vpop.permute.xlu0 %678
    %682 = vset.pattern.permute.xlu0 0
    %683 = vperm.xlu0 %682, %v673
    %v684 = vpop.permute.xlu0 %683
    %687 = vset.pattern.permute.xlu0 0
    %688 = vperm.xlu0 %687, %v674
    %v689 = vpop.permute.xlu0 %688
    %692 = vset.pattern.permute.xlu0 0
    %693 = vperm.xlu0 %692, %v675
    %v694 = vpop.permute.xlu0 %693
    %v696 = vmul.f32 %v664, %v679
    %v697 = vmul.f32 %v665, %v679
    %v698 = vmul.f32 %v666, %v684
    %v699 = vmul.f32 %v667, %v684
    %v700 = vmul.f32 %v668, %v689
    %v701 = vmul.f32 %v669, %v689
    %v702 = vmul.f32 %v670, %v694
    %v703 = vmul.f32 %v671, %v694
    %v704 = vadd.f32 %v696, %v698
    %v705 = vadd.f32 %v704, %v700
    %v706 = vadd.f32 %v705, %v702
    %v707 = vrot.slane %v706, 4
    %v708 = vadd.f32 %v706, %v707
    %v709 = vrot.slane %v708, 2
    %v710 = vadd.f32 %v708, %v709
    %v711 = vrot.slane %v710, 1
    %v712 = vadd.f32 %v710, %v711
    %v713 = vadd.f32 %v697, %v699
    %v714 = vadd.f32 %v713, %v701
    %v715 = vadd.f32 %v714, %v703
    %v716 = vrot.slane %v715, 4
    %v717 = vadd.f32 %v715, %v716
    %v718 = vrot.slane %v717, 2
    %v719 = vadd.f32 %v717, %v718
    %v720 = vrot.slane %v719, 1
    %v721 = vadd.f32 %v719, %v720
    %v722 = vld [vmem:[#allocation2] sm:$0x1]
    %724 = vset.pattern.permute.xlu0 0
    %725 = vperm.xlu0 %724, %v722
    %v726 = vpop.permute.xlu0 %725
    %v728 = vlaneseq
    %v729 = vshrl.u32 %v728, 7
    %v730 = vsub.s32 0, %v729
    %v731 = vrot.slane %v726, %v730
    %v732 = vadd.f32 %v712, %v731
    %v733 = vadd.f32 %v721, %v731
    %v736 = vcombine.low %v732, %v733
    %v738 = vunpack.c.l.s4 1966171168
    %v739 = vunpack.c.0.s8 %v738
    %v740 = vlaneseq
    %v741 = vshrl.u32 %v740, 7
    %v742 = vsub.s32 %v739, %v741
    %v743 = vrot.slane %v736, %v742
    %v745 = vunpack.c.l.s4 1966171168
    %v746 = vunpack.c.0.s8 %v745
    %v747 = vlaneseq
    %v748 = vshrl.u32 %v747, 7
    %v749 = vsub.s32 %v746, %v748
    %v750 = vrot.slane %v743, %v749
    %v752 = vlaneseq
    %vm753 = vcmp.ge.s32.totalorder %v752, 0
    %vm754 = vcmp.lt.s32.totalorder %v752, 256
    %vm755 = vmand %vm753, %vm754
    %756 = vst.msk [vmem:[#allocation3] sm:$0x3] %vm755, %v750
    // Predicated region
    $region38: #{mlp3newft_forward.1} parent=1 // pred_check
      _
    $region39: #{mlp3newft_forward.1} parent=1 // pred_check_branch
      %758 = sbr.rel (0) target = $region41
    $region40: #{mlp3newft_forward.1} parent=1 // pred_region
      %s760 = ssub.s32 32, 32
      %761 = vsyncadd [#allocation4], %s760
      %s763 = sshll.u32 [#allocation3], 4
      %s764 = int_to_ptr.vmem [resolvable:$true] %s763
      %766 = dma.vmem_to_hbm [thread:$0]  %s764, 32, %s9, [#allocation4]
    $region41: #{mlp3newft_forward.1} parent=1 // pred_fallthru
      _
    // Predicated region
    $region42: #{mlp3newft_forward.1} parent=1 // pred_check
      _
    $region43: #{mlp3newft_forward.1} parent=1 // pred_check_branch
      %768 = sbr.rel (0) target = $region45
    $region44: #{mlp3newft_forward.1} parent=1 // pred_region
      %769 = dma.done [#allocation4], 32
    $region45: #{mlp3newft_forward.1} parent=1 // pred_fallthru
      _
    %770 = vsyncpa [#allocation4], 1

</llo_original>
